<compile_context>
chip_gen: v7x
topology: tpu7x:2x2x1
jax: 0.10.0
libtpu: 0.0.40
codegen_flags: <defaults>
</compile_context>

<pallas_src>
import functools

import jax
import jax.numpy as jnp
from jax.experimental import pallas as pl
from jax.experimental.pallas import tpu as pltpu


def _round_up(a, b):
    return ((a + b - 1) // b) * b


def _downpool_kernel(x_ref, w_ref, b_ref, o_ref):
    # x_ref: (tm, pH) in the caller's dtype; cast to the MXU compute dtype in
    # registers (cheap VPU work, hidden under the DMA of the next tile).
    # w_ref: (pH, qH) compute dtype (pre-transposed); b_ref: (1, qH) f32.
    x = x_ref[...].astype(w_ref.dtype)
    acc = jnp.dot(x, w_ref[...], preferred_element_type=jnp.float32)
    o_ref[...] = (acc + b_ref[...]).astype(o_ref.dtype)


def prepare_down_pool_params(weight, bias, *, compute_dtype=jnp.bfloat16):
    """One-time param prep (outside the hot path): PyTorch Linear weight
    (qH, pH) -> (pH, qH) in the MXU compute dtype; bias -> f32 row vector."""
    w_t = jnp.asarray(weight).T.astype(compute_dtype)
    b2d = jnp.asarray(bias).astype(jnp.float32).reshape(1, -1)
    return w_t, b2d


@functools.partial(
    jax.jit,
    static_argnames=("H", "q", "p", "tm", "out_dtype", "single_buffer_params"))
def down_pool(x, w_t, b2d, *, H, q, p, tm=4096, out_dtype=None,
              single_buffer_params=True):
    """x: (B, L, H); w_t: (p*H, q*H) pre-transposed weight; b2d: (1, q*H) f32."""
    B, L, Hin = x.shape
    assert Hin == H and L % p == 0
    pH, qH = p * H, q * H
    assert w_t.shape == (pH, qH) and b2d.shape == (1, qH)

    M = B * (L // p)
    out_dt = jnp.dtype(out_dtype) if out_dtype is not None else x.dtype

    # Pure-metadata reshape (no HBM copy); the kernel DMAs X in this dtype.
    x2d = x.reshape(M, pH)

    x_bytes = jnp.dtype(x.dtype).itemsize
    w_bytes = jnp.dtype(w_t.dtype).itemsize
    o_bytes = jnp.dtype(out_dt).itemsize

    # Generation-aware VMEM budget (leave headroom for compiler scratch):
    # v7x: 64 MiB/TC -> ~56 MiB budget; v5e/v6e: 128 MiB -> ~112 MiB budget.
    try:
        vmem_cap = int(pltpu.get_tpu_info().vmem_capacity_bytes)
    except Exception:
        vmem_cap = 64 << 20  # conservative fallback (v7x-sized)
    vmem_budget = vmem_cap - max(8 << 20, vmem_cap // 8)

    # Row tile: as large as useful (amortizes per-grid-step overhead), multiple
    # of 8 sublanes, clamped so the grid keeps >=2 steps (megacore split on
    # v7x) and the working set stays inside the VMEM budget.
    tm_eff = min(tm, max(8, _round_up(pl.cdiv(M, 2), 8)))
    tm_eff = _round_up(tm_eff, 8)

    wb_bufs = 1 if single_buffer_params else 2

    def vmem_need(t):
        # double-buffered X and OUT tiles; weight/bias resident.
        return (2 * t * pH * x_bytes + 2 * t * qH * o_bytes
                + wb_bufs * (pH * qH * w_bytes + qH * 4))

    while tm_eff > 64 and vmem_need(tm_eff) > vmem_budget:
        tm_eff = max(64, _round_up(tm_eff // 2, 8))
    # TODO(synk): if (tm,pH)+(pH,qH) blocks ever overflow VMEM at very deep
    # SaShiMi levels, add a K ("arbitrary") grid axis with an f32 accumulator
    # instead of shrinking tm further.

    grid = (pl.cdiv(M, tm_eff),)  # partial tail block is masked by Pallas
    vmem_limit = int(min(vmem_cap - (2 << 20),
                         max(32 << 20, vmem_need(tm_eff) + (4 << 20))))

    cost = pl.CostEstimate(
        flops=2 * M * pH * qH,
        transcendentals=0,
        bytes_accessed=(M * pH * x_bytes + pH * qH * w_bytes
                        + qH * 4 + M * qH * o_bytes),
    )

    resident = dict(pipeline_mode=pl.Buffered(1)) if single_buffer_params else {}

    y2d = pl.pallas_call(
        _downpool_kernel,
        out_shape=jax.ShapeDtypeStruct((M, qH), out_dt),
        grid_spec=pltpu.PrefetchScalarGridSpec(
            num_scalar_prefetch=0,
            grid=grid,
            in_specs=[
                pl.BlockSpec((tm_eff, pH), lambda i: (i, 0)),
                pl.BlockSpec((pH, qH), lambda i: (0, 0), **resident),  # weight
                pl.BlockSpec((1, qH), lambda i: (0, 0), **resident),   # bias
            ],
            out_specs=pl.BlockSpec((tm_eff, qH), lambda i: (i, 0)),
        ),
        compiler_params=pltpu.CompilerParams(
            dimension_semantics=("parallel",),
            vmem_limit_bytes=vmem_limit,
        ),
        cost_estimate=cost,
    )(x2d, w_t, b2d)

    return y2d.reshape(B, L // p, qH)


def reference_down_pool(x, weight, bias, *, H, q, p):
    B, L, _ = x.shape
    x2d = x.reshape(B, L // p, H * p)
    return jnp.einsum("blk,ok->blo", x2d, weight) + bias


if __name__ == "__main__":
    # Module-consistent small shapes: H=32 model dim, p=4 pooling, q=4 expansion.
    H, q, p = 32, 4, 4
    pH, qH = p * H, q * H

    key = jax.random.PRNGKey(0)
    kx, kw, kb, kx2 = jax.random.split(key, 4)

    # Deterministic synthetic nn.Linear(p*H, q*H) params (PyTorch layout).
    bound = 1.0 / jnp.sqrt(jnp.float32(pH))
    weight = jax.random.uniform(kw, (qH, pH), jnp.float32, -bound, bound)
    bias = jax.random.uniform(kb, (qH,), jnp.float32, -bound, bound)
    w_t, b2d = prepare_down_pool_params(weight, bias)   # once, outside hot path

    use_single_buffer = True

    def run(x, **kw):
        # Safety fallback: if this JAX build rejects pipeline_mode=pl.Buffered(1)
        # on top-level pallas_call BlockSpecs (a VMEM-only optimization), retry
        # with standard double-buffered params.
        global use_single_buffer
        if use_single_buffer:
            try:
                return down_pool(x, w_t, b2d, H=H, q=q, p=p,
                                 single_buffer_params=True, **kw)
            except Exception:
                use_single_buffer = False
        return down_pool(x, w_t, b2d, H=H, q=q, p=p,
                         single_buffer_params=False, **kw)

    # Case 1: the module's intended small forward (B=2, L=16 -> M=8 rows).
    B, L = 2, 16
    x = jax.random.normal(kx, (B, L, H), dtype=jnp.float32)
    y = run(x)
    jax.block_until_ready(y)
    y_ref = reference_down_pool(x, weight, bias, H=H, q=q, p=p)
    assert y.shape == (B, L // p, qH), y.shape
    assert y.dtype == x.dtype
    assert jnp.allclose(y, y_ref, atol=5e-2, rtol=5e-2)  # bf16 matmul tolerance

    # Case 2: exercises the masked partial tail block (M=36, tile=24, grid=2).
    B2, L2 = 2, 72
    x2 = jax.random.normal(kx2, (B2, L2, H), dtype=jnp.float32)
    y2 = run(x2)
    jax.block_until_ready(y2)
    y2_ref = reference_down_pool(x2, weight, bias, H=H, q=q, p=p)
    assert y2.shape == (B2, L2 // p, qH), y2.shape
    assert jnp.allclose(y2, y2_ref, atol=5e-2, rtol=5e-2)

    # Case 3: bf16 output knob (downstream SaShiMi block consumes bf16).
    y3 = run(x, out_dtype=jnp.bfloat16)
    jax.block_until_ready(y3)
    assert y3.dtype == jnp.bfloat16
    assert jnp.allclose(y3.astype(jnp.float32), y_ref, atol=1e-1, rtol=1e-1)

    print("KERNEL_OK")
</pallas_src>

<mosaic_0001>
module attributes {stable_mosaic.version = 11 : i64} {
  func.func @_downpool_kernel(%arg0: i32, %arg1: memref<8x128xf32, #tpu.memory_space<vmem>>, %arg2: memref<128x128xbf16, #tpu.memory_space<vmem>>, %arg3: memref<1x128xf32, #tpu.memory_space<vmem>>, %arg4: memref<8x128xf32, #tpu.memory_space<vmem>>) attributes {dimension_semantics = [#tpu.dimension_semantics<parallel>], iteration_bounds = array<i64: 1>, scalar_prefetch = 0 : i64, scratch_operands = 0 : i64, tpu.core_type = #tpu.core_type<tc>, window_params = [{transform_indices = @transform_0, window_bounds = array<i64: 8, 128>}, {pipeline_mode = #tpu.pipeline_mode<synchronous>, transform_indices = @transform_1, window_bounds = array<i64: 128, 128>}, {pipeline_mode = #tpu.pipeline_mode<synchronous>, transform_indices = @transform_2, window_bounds = array<i64: 1, 128>}, {transform_indices = @transform_3, window_bounds = array<i64: 8, 128>}]} {
    %c0 = arith.constant 0 : index
    %c0_0 = arith.constant 0 : index
    %0 = vector.load %arg1[%c0, %c0_0] : memref<8x128xf32, #tpu.memory_space<vmem>>, vector<8x128xf32>
    %1 = arith.truncf %0 : vector<8x128xf32> to vector<8x128xbf16>
    %c0_1 = arith.constant 0 : index
    %c0_2 = arith.constant 0 : index
    %2 = vector.load %arg2[%c0_1, %c0_2] : memref<128x128xbf16, #tpu.memory_space<vmem>>, vector<128x128xbf16>
    %cst = arith.constant dense<0.000000e+00> : vector<8x128xf32>
    %3 = tpu.matmul %1, %2, %cst {dimension_numbers = #tpu.dot_dimension_numbers<[1], [0], [0], [1], [0, 0, 1, 1], [], []>} : vector<8x128xbf16>, vector<128x128xbf16>, vector<8x128xf32> -> vector<8x128xf32>
    %c0_3 = arith.constant 0 : index
    %c0_4 = arith.constant 0 : index
    %4 = vector.load %arg3[%c0_3, %c0_4] : memref<1x128xf32, #tpu.memory_space<vmem>>, vector<1x128xf32>
    %5 = vector.broadcast %4 : vector<1x128xf32> to vector<8x128xf32>
    %6 = arith.addf %3, %5 : vector<8x128xf32>
    %c0_5 = arith.constant 0 : index
    %c0_6 = arith.constant 0 : index
    %7 = vector.load %arg4[%c0_5, %c0_6] : memref<8x128xf32, #tpu.memory_space<vmem>>, vector<8x128xf32>
    tpu.vector_store %arg4[%c0_5, %c0_6], %6 {strides = array<i32>} : memref<8x128xf32, #tpu.memory_space<vmem>>, vector<8x128xf32>,
    return
  }
  func.func @transform_0(%arg0: i32) -> (i32, i32) {
    %c0_i32 = arith.constant 0 : i32
    %c0_i32_0 = arith.constant 0 : i32
    return %arg0, %c0_i32 : i32, i32
  }
  func.func @transform_1(%arg0: i32) -> (i32, i32) {
    %c0_i32 = arith.constant 0 : i32
    %c0_i32_0 = arith.constant 0 : i32
    %c0_i32_1 = arith.constant 0 : i32
    return %c0_i32, %c0_i32_0 : i32, i32
  }
  func.func @transform_2(%arg0: i32) -> (i32, i32) {
    %c0_i32 = arith.constant 0 : i32
    %c0_i32_0 = arith.constant 0 : i32
    %c0_i32_1 = arith.constant 0 : i32
    return %c0_i32, %c0_i32_0 : i32, i32
  }
  func.func @transform_3(%arg0: i32) -> (i32, i32) {
    %c0_i32 = arith.constant 0 : i32
    %c0_i32_0 = arith.constant 0 : i32
    return %arg0, %c0_i32 : i32, i32
  }
}

module attributes {stable_mosaic.version = 11 : i64} {
  func.func @_downpool_kernel(%arg0: i32, %arg1: memref<8x128xf32, #tpu.memory_space<vmem>>, %arg2: memref<128x128xbf16, #tpu.memory_space<vmem>>, %arg3: memref<1x128xf32, #tpu.memory_space<vmem>>, %arg4: memref<8x128xf32, #tpu.memory_space<vmem>>) attributes {dimension_semantics = [#tpu.dimension_semantics<parallel>], iteration_bounds = array<i64: 1>, scalar_prefetch = 0 : i64, scratch_operands = 0 : i64, tpu.core_type = #tpu.core_type<tc>, window_params = [{transform_indices = @transform_0, window_bounds = array<i64: 8, 128>}, {pipeline_mode = #tpu.pipeline_mode<synchronous>, transform_indices = @transform_1, window_bounds = array<i64: 128, 128>}, {pipeline_mode = #tpu.pipeline_mode<synchronous>, transform_indices = @transform_2, window_bounds = array<i64: 1, 128>}, {transform_indices = @transform_3, window_bounds = array<i64: 8, 128>}]} {
    %c0 = arith.constant 0 : index
    %c0_0 = arith.constant 0 : index
    %0 = vector.load %arg1[%c0, %c0_0] : memref<8x128xf32, #tpu.memory_space<vmem>>, vector<8x128xf32>
    %1 = arith.truncf %0 : vector<8x128xf32> to vector<8x128xbf16>
    %c0_1 = arith.constant 0 : index
    %c0_2 = arith.constant 0 : index
    %2 = vector.load %arg2[%c0_1, %c0_2] : memref<128x128xbf16, #tpu.memory_space<vmem>>, vector<128x128xbf16>
    %cst = arith.constant dense<0.000000e+00> : vector<8x128xf32>
    %3 = tpu.matmul %1, %2, %cst {dimension_numbers = #tpu.dot_dimension_numbers<[1], [0], [0], [1], [0, 0, 1, 1], [], []>} : vector<8x128xbf16>, vector<128x128xbf16>, vector<8x128xf32> -> vector<8x128xf32>
    %c0_3 = arith.constant 0 : index
    %c0_4 = arith.constant 0 : index
    %4 = vector.load %arg3[%c0_3, %c0_4] : memref<1x128xf32, #tpu.memory_space<vmem>>, vector<1x128xf32>
    %5 = vector.broadcast %4 : vector<1x128xf32> to vector<8x128xf32>
    %6 = arith.addf %3, %5 : vector<8x128xf32>
    %c0_5 = arith.constant 0 : index
    %c0_6 = arith.constant 0 : index
    %7 = vector.load %arg4[%c0_5, %c0_6] : memref<8x128xf32, #tpu.memory_space<vmem>>, vector<8x128xf32>
    tpu.vector_store %arg4[%c0_5, %c0_6], %6 {strides = array<i32>} : memref<8x128xf32, #tpu.memory_space<vmem>>, vector<8x128xf32>,
    return
  }
  func.func @transform_0(%arg0: i32) -> (i32, i32) {
    %c0_i32 = arith.constant 0 : i32
    %c0_i32_0 = arith.constant 0 : i32
    return %arg0, %c0_i32 : i32, i32
  }
  func.func @transform_1(%arg0: i32) -> (i32, i32) {
    %c0_i32 = arith.constant 0 : i32
    %c0_i32_0 = arith.constant 0 : i32
    %c0_i32_1 = arith.constant 0 : i32
    return %c0_i32, %c0_i32_0 : i32, i32
  }
  func.func @transform_2(%arg0: i32) -> (i32, i32) {
    %c0_i32 = arith.constant 0 : i32
    %c0_i32_0 = arith.constant 0 : i32
    %c0_i32_1 = arith.constant 0 : i32
    return %c0_i32, %c0_i32_0 : i32, i32
  }
  func.func @transform_3(%arg0: i32) -> (i32, i32) {
    %c0_i32 = arith.constant 0 : i32
    %c0_i32_0 = arith.constant 0 : i32
    return %arg0, %c0_i32 : i32, i32
  }
}

</mosaic_0001>

<llo_original>
// kernel: down_pool.1
$region0: #{down_pool.1}
  #allocation0 [shape = 'u32[]', space=smem, size = 0x4, offset = 0x4, fixed_abs, tag = 'smem constant byte address 0x4 - core index']
  #allocation1 [shape = 'u32[144,128]{1,0:T(1,128)}', space=vmem, size = 0x12000, scoped, tag = 'internal scratch']
  %s0 = inlined_call_operand.vmem [shape: f32[8,128], index: 0, kind: input, shape index: {}]
  %s1 = inlined_call_operand.hbm [shape: bf16[128,128], index: 1, kind: input, shape index: {}]
  %s2 = inlined_call_operand.vmem [shape: f32[1,128], index: 2, kind: input, shape index: {}]
  %s3 = inlined_call_operand.hbm [shape: f32[8,128], index: 3, kind: output, shape index: {}]
  %s4 = sld [smem:[#allocation0]]
  $region26: #{down_pool.1} parent=0
    _
  %s6 = ssub.s32 1, %s4
  %s7 = scalar_select 0, %s6, %s4
  $region1: #{down_pool.1} parent=0
    #allocation2 [shape = 'u8[32768]{0}', space=vmem, size = 0x8000, scoped, tag = 'input window, operand 1, single buffered']
    #allocation3 [shape = 's32[1]{0}', space=sflag, size = 0x4, scoped, tag = 'scoped memory for down_pool.1']
    #allocation4 [shape = 's32[1]{0}', space=sflag, size = 0x4, scoped, tag = 'scoped memory for down_pool.1']
    #allocation5 [shape = 'u8[4096]{0}', space=vmem, size = 0x1000, scoped, tag = 'output window, operand 0, single buffered']
    %8 = vsyncpa [#allocation3], 0
    %9 = vsyncpa [#allocation4], 0
    // Predicated region
    $region2: #{down_pool.1} parent=1 // pred_check
      _
    $region3: #{down_pool.1} parent=1 // pred_check_branch
      %11 = sbr.rel (0) target = $region5
    $region4: #{down_pool.1} parent=1 // pred_region
      _
    $region5: #{down_pool.1} parent=1 // pred_fallthru
      _
    // Predicated region
    $region6: #{down_pool.1} parent=1 // pred_check
      _
    $region7: #{down_pool.1} parent=1 // pred_check_branch
      %13 = sbr.rel (0) target = $region9
    $region8: #{down_pool.1} parent=1 // pred_region
      %s15 = ssub.s32 1024, 1024
      %16 = vsyncadd [#allocation3], %s15
      %s17 = sshll.u32 [#allocation2], 4
      %s18 = int_to_ptr.vmem [resolvable:$true] %s17
      %23 = dma.hbm_to_vmem [thread:$0]  %s1, 1024, %s18, [#allocation3], 64, 64, 4
    $region9: #{down_pool.1} parent=1 // pred_fallthru
      _
    // Predicated region
    $region10: #{down_pool.1} parent=1 // pred_check
      _
    $region11: #{down_pool.1} parent=1 // pred_check_branch
      %25 = sbr.rel (0) target = $region13
    $region12: #{down_pool.1} parent=1 // pred_region
      _
    $region13: #{down_pool.1} parent=1 // pred_fallthru
      _
    // Predicated region
    $region14: #{down_pool.1} parent=1 // pred_check
      _
    $region15: #{down_pool.1} parent=1 // pred_check_branch
      %27 = sbr.rel (0) target = $region17
    $region16: #{down_pool.1} parent=1 // pred_region
      %28 = dma.done [#allocation3], 1024
    $region17: #{down_pool.1} parent=1 // pred_fallthru
      _
    %v30 = vld [vmem:[%s0] sm:$0xff]
    %v31 = vpack.c.bf16 %v30, %v30
    %v32 = vld [vmem:[#allocation2] sm:$0xf]
    %v33 = vld [vmem:[#allocation2 + $0x4] sm:$0xf]
    %v34 = vld [vmem:[#allocation2 + $0x8] sm:$0xf]
    %v35 = vld [vmem:[#allocation2 + $0xc] sm:$0xf]
    %v36 = vld [vmem:[#allocation2 + $0x10] sm:$0xf]
    %v37 = vld [vmem:[#allocation2 + $0x14] sm:$0xf]
    %v38 = vld [vmem:[#allocation2 + $0x18] sm:$0xf]
    %v39 = vld [vmem:[#allocation2 + $0x1c] sm:$0xf]
    %v40 = vld [vmem:[#allocation2 + $0x20] sm:$0xf]
    %v41 = vld [vmem:[#allocation2 + $0x24] sm:$0xf]
    %v42 = vld [vmem:[#allocation2 + $0x28] sm:$0xf]
    %v43 = vld [vmem:[#allocation2 + $0x2c] sm:$0xf]
    %v44 = vld [vmem:[#allocation2 + $0x30] sm:$0xf]
    %v45 = vld [vmem:[#allocation2 + $0x34] sm:$0xf]
    %v46 = vld [vmem:[#allocation2 + $0x38] sm:$0xf]
    %v47 = vld [vmem:[#allocation2 + $0x3c] sm:$0xf]
    %v48 = vld [vmem:[%s2] sm:$0x1]
    %v50 = vlaneseq
    %v51 = vshrl.u32 %v50, 7
    %v52 = vsub.s32 0, %v51
    %v53 = vrot.slane %v48, %v52
    %v71 = vunpack.c.l.b16 %v32
    %v72 = vunpack.c.l.b16 %v33
    %v73 = vunpack.c.l.b16 %v34
    %v74 = vunpack.c.l.b16 %v35
    %v75 = vunpack.c.l.b16 %v36
    %v76 = vunpack.c.l.b16 %v37
    %v77 = vunpack.c.l.b16 %v38
    %v78 = vunpack.c.l.b16 %v39
    %v79 = vunpack.c.l.b16 %v40
    %v80 = vunpack.c.l.b16 %v41
    %v81 = vunpack.c.l.b16 %v42
    %v82 = vunpack.c.l.b16 %v43
    %v83 = vunpack.c.l.b16 %v44
    %v84 = vunpack.c.l.b16 %v45
    %v85 = vunpack.c.l.b16 %v46
    %v86 = vunpack.c.l.b16 %v47
    %v87 = vpack.c.b16 %v72, %v71
    %v88 = vpack.c.b16 %v74, %v73
    %v89 = vpack.c.b16 %v76, %v75
    %v90 = vpack.c.b16 %v78, %v77
    %v91 = vpack.c.b16 %v80, %v79
    %v92 = vpack.c.b16 %v82, %v81
    %v93 = vpack.c.b16 %v84, %v83
    %v94 = vpack.c.b16 %v86, %v85
    %103 = vmatprep.subr.bf16.mxu0 0
    %104 = vmatpush1.bf16.msra.mxu0 %v87
    %105 = vmatprep.subr.bf16.mxu0 0
    %106 = vmatpush1.bf16.msra.mxu0 %v88
    %107 = vmatprep.subr.bf16.mxu0 0
    %108 = vmatpush1.bf16.msra.mxu0 %v89
    %109 = vmatprep.subr.bf16.mxu0 0
    %110 = vmatpush1.bf16.msra.mxu0 %v90
    %111 = vmatprep.subr.bf16.mxu0 0
    %112 = vmatpush1.bf16.msra.mxu0 %v91
    %113 = vmatprep.subr.bf16.mxu0 0
    %114 = vmatpush1.bf16.msra.mxu0 %v92
    %115 = vmatprep.subr.bf16.mxu0 0
    %116 = vmatpush1.bf16.msra.mxu0 %v93
    %117 = vmatprep.subr.bf16.mxu0 0
    %118 = vmatpush1.bf16.msra.mxu0 %v94
    %119 = vmatprep.subr.bf16.mxu0 0
    %120 = vmatpush1.bf16.msra.mxu0 0
    %121 = vmatprep.subr.bf16.mxu0 0
    %122 = vmatpush1.bf16.msra.mxu0 0
    %123 = vmatprep.subr.bf16.mxu0 0
    %124 = vmatpush1.bf16.msra.mxu0 0
    %125 = vmatprep.subr.bf16.mxu0 0
    %126 = vmatpush1.bf16.msra.mxu0 0
    %127 = vmatprep.subr.bf16.mxu0 0
    %128 = vmatpush1.bf16.msra.mxu0 0
    %129 = vmatprep.subr.bf16.mxu0 0
    %130 = vmatpush1.bf16.msra.mxu0 0
    %131 = vmatprep.subr.bf16.mxu0 0
    %132 = vmatpush1.bf16.msra.mxu0 0
    %133 = vmatprep.subr.bf16.mxu0 0
    %134 = vmatpush1.bf16.msra.mxu0 0
    %135 = vmatprep.mubr.bf16.mxu0 0
    %136 = vmatmul.mubr.bf16.gmra.mrb[0].mxu0 %v31
    %v137 = vpop.f32.mrb[0].mxu0
    %v138 = vadd.f32 %v53, %v137
    %v139 = vpop.f32.mrb[0].mxu0
    %v140 = vpop.f32.mrb[0].mxu0
    %v141 = vpop.f32.mrb[0].mxu0
    %142 = vdwg.mxu0
    %143 = vst [vmem:[#allocation5] sm:$0xff] %v138
    // Predicated region
    $region18: #{down_pool.1} parent=1 // pred_check
      _
    $region19: #{down_pool.1} parent=1 // pred_check_branch
      %145 = sbr.rel (0) target = $region21
    $region20: #{down_pool.1} parent=1 // pred_region
      %s147 = ssub.s32 128, 128
      %148 = vsyncadd [#allocation4], %s147
      %s150 = sshll.u32 [#allocation5], 4
      %s151 = int_to_ptr.vmem [resolvable:$true] %s150
      %153 = dma.vmem_to_hbm [thread:$0]  %s151, 128, %s3, [#allocation4]
    $region21: #{down_pool.1} parent=1 // pred_fallthru
      _
    // Predicated region
    $region22: #{down_pool.1} parent=1 // pred_check
      _
    $region23: #{down_pool.1} parent=1 // pred_check_branch
      %155 = sbr.rel (0) target = $region25
    $region24: #{down_pool.1} parent=1 // pred_region
      %156 = dma.done [#allocation4], 128
    $region25: #{down_pool.1} parent=1 // pred_fallthru
      _
    %157 = vsyncpa [#allocation3], 1
    %158 = vsyncpa [#allocation4], 1

// kernel: down_pool.1
$region0: #{down_pool.1}
  #allocation0 [shape = 'u32[]', space=smem, size = 0x4, offset = 0x4, fixed_abs, tag = 'smem constant byte address 0x4 - core index']
  #allocation1 [shape = 'u32[144,128]{1,0:T(1,128)}', space=vmem, size = 0x12000, scoped, tag = 'internal scratch']
  %s0 = inlined_call_operand.vmem [shape: f32[8,128], index: 0, kind: input, shape index: {}]
  %s1 = inlined_call_operand.hbm [shape: bf16[128,128], index: 1, kind: input, shape index: {}]
  %s2 = inlined_call_operand.vmem [shape: f32[1,128], index: 2, kind: input, shape index: {}]
  %s3 = inlined_call_operand.hbm [shape: f32[8,128], index: 3, kind: output, shape index: {}]
  %s4 = sld [smem:[#allocation0]]
  $region26: #{down_pool.1} parent=0
    _
  %s6 = ssub.s32 1, %s4
  %s7 = scalar_select 0, %s6, %s4
  $region1: #{down_pool.1} parent=0
    #allocation2 [shape = 'u8[32768]{0}', space=vmem, size = 0x8000, scoped, tag = 'input window, operand 1, single buffered']
    #allocation3 [shape = 's32[1]{0}', space=sflag, size = 0x4, scoped, tag = 'scoped memory for down_pool.1']
    #allocation4 [shape = 's32[1]{0}', space=sflag, size = 0x4, scoped, tag = 'scoped memory for down_pool.1']
    #allocation5 [shape = 'u8[4096]{0}', space=vmem, size = 0x1000, scoped, tag = 'output window, operand 0, single buffered']
    %8 = vsyncpa [#allocation3], 0
    %9 = vsyncpa [#allocation4], 0
    // Predicated region
    $region2: #{down_pool.1} parent=1 // pred_check
      _
    $region3: #{down_pool.1} parent=1 // pred_check_branch
      %11 = sbr.rel (0) target = $region5
    $region4: #{down_pool.1} parent=1 // pred_region
      _
    $region5: #{down_pool.1} parent=1 // pred_fallthru
      _
    // Predicated region
    $region6: #{down_pool.1} parent=1 // pred_check
      _
    $region7: #{down_pool.1} parent=1 // pred_check_branch
      %13 = sbr.rel (0) target = $region9
    $region8: #{down_pool.1} parent=1 // pred_region
      %s15 = ssub.s32 1024, 1024
      %16 = vsyncadd [#allocation3], %s15
      %s17 = sshll.u32 [#allocation2], 4
      %s18 = int_to_ptr.vmem [resolvable:$true] %s17
      %23 = dma.hbm_to_vmem [thread:$0]  %s1, 1024, %s18, [#allocation3], 64, 64, 4
    $region9: #{down_pool.1} parent=1 // pred_fallthru
      _
    // Predicated region
    $region10: #{down_pool.1} parent=1 // pred_check
      _
    $region11: #{down_pool.1} parent=1 // pred_check_branch
      %25 = sbr.rel (0) target = $region13
    $region12: #{down_pool.1} parent=1 // pred_region
      _
    $region13: #{down_pool.1} parent=1 // pred_fallthru
      _
    // Predicated region
    $region14: #{down_pool.1} parent=1 // pred_check
      _
    $region15: #{down_pool.1} parent=1 // pred_check_branch
      %27 = sbr.rel (0) target = $region17
    $region16: #{down_pool.1} parent=1 // pred_region
      %28 = dma.done [#allocation3], 1024
    $region17: #{down_pool.1} parent=1 // pred_fallthru
      _
    %v30 = vld [vmem:[%s0] sm:$0xff]
    %v31 = vpack.c.bf16 %v30, %v30
    %v32 = vld [vmem:[#allocation2] sm:$0xf]
    %v33 = vld [vmem:[#allocation2 + $0x4] sm:$0xf]
    %v34 = vld [vmem:[#allocation2 + $0x8] sm:$0xf]
    %v35 = vld [vmem:[#allocation2 + $0xc] sm:$0xf]
    %v36 = vld [vmem:[#allocation2 + $0x10] sm:$0xf]
    %v37 = vld [vmem:[#allocation2 + $0x14] sm:$0xf]
    %v38 = vld [vmem:[#allocation2 + $0x18] sm:$0xf]
    %v39 = vld [vmem:[#allocation2 + $0x1c] sm:$0xf]
    %v40 = vld [vmem:[#allocation2 + $0x20] sm:$0xf]
    %v41 = vld [vmem:[#allocation2 + $0x24] sm:$0xf]
    %v42 = vld [vmem:[#allocation2 + $0x28] sm:$0xf]
    %v43 = vld [vmem:[#allocation2 + $0x2c] sm:$0xf]
    %v44 = vld [vmem:[#allocation2 + $0x30] sm:$0xf]
    %v45 = vld [vmem:[#allocation2 + $0x34] sm:$0xf]
    %v46 = vld [vmem:[#allocation2 + $0x38] sm:$0xf]
    %v47 = vld [vmem:[#allocation2 + $0x3c] sm:$0xf]
    %v48 = vld [vmem:[%s2] sm:$0x1]
    %v50 = vlaneseq
    %v51 = vshrl.u32 %v50, 7
    %v52 = vsub.s32 0, %v51
    %v53 = vrot.slane %v48, %v52
    %v71 = vunpack.c.l.b16 %v32
    %v72 = vunpack.c.l.b16 %v33
    %v73 = vunpack.c.l.b16 %v34
    %v74 = vunpack.c.l.b16 %v35
    %v75 = vunpack.c.l.b16 %v36
    %v76 = vunpack.c.l.b16 %v37
    %v77 = vunpack.c.l.b16 %v38
    %v78 = vunpack.c.l.b16 %v39
    %v79 = vunpack.c.l.b16 %v40
    %v80 = vunpack.c.l.b16 %v41
    %v81 = vunpack.c.l.b16 %v42
    %v82 = vunpack.c.l.b16 %v43
    %v83 = vunpack.c.l.b16 %v44
    %v84 = vunpack.c.l.b16 %v45
    %v85 = vunpack.c.l.b16 %v46
    %v86 = vunpack.c.l.b16 %v47
    %v87 = vpack.c.b16 %v72, %v71
    %v88 = vpack.c.b16 %v74, %v73
    %v89 = vpack.c.b16 %v76, %v75
    %v90 = vpack.c.b16 %v78, %v77
    %v91 = vpack.c.b16 %v80, %v79
    %v92 = vpack.c.b16 %v82, %v81
    %v93 = vpack.c.b16 %v84, %v83
    %v94 = vpack.c.b16 %v86, %v85
    %103 = vmatprep.subr.bf16.mxu0 0
    %104 = vmatpush1.bf16.msra.mxu0 %v87
    %105 = vmatprep.subr.bf16.mxu0 0
    %106 = vmatpush1.bf16.msra.mxu0 %v88
    %107 = vmatprep.subr.bf16.mxu0 0
    %108 = vmatpush1.bf16.msra.mxu0 %v89
    %109 = vmatprep.subr.bf16.mxu0 0
    %110 = vmatpush1.bf16.msra.mxu0 %v90
    %111 = vmatprep.subr.bf16.mxu0 0
    %112 = vmatpush1.bf16.msra.mxu0 %v91
    %113 = vmatprep.subr.bf16.mxu0 0
    %114 = vmatpush1.bf16.msra.mxu0 %v92
    %115 = vmatprep.subr.bf16.mxu0 0
    %116 = vmatpush1.bf16.msra.mxu0 %v93
    %117 = vmatprep.subr.bf16.mxu0 0
    %118 = vmatpush1.bf16.msra.mxu0 %v94
    %119 = vmatprep.subr.bf16.mxu0 0
    %120 = vmatpush1.bf16.msra.mxu0 0
    %121 = vmatprep.subr.bf16.mxu0 0
    %122 = vmatpush1.bf16.msra.mxu0 0
    %123 = vmatprep.subr.bf16.mxu0 0
    %124 = vmatpush1.bf16.msra.mxu0 0
    %125 = vmatprep.subr.bf16.mxu0 0
    %126 = vmatpush1.bf16.msra.mxu0 0
    %127 = vmatprep.subr.bf16.mxu0 0
    %128 = vmatpush1.bf16.msra.mxu0 0
    %129 = vmatprep.subr.bf16.mxu0 0
    %130 = vmatpush1.bf16.msra.mxu0 0
    %131 = vmatprep.subr.bf16.mxu0 0
    %132 = vmatpush1.bf16.msra.mxu0 0
    %133 = vmatprep.subr.bf16.mxu0 0
    %134 = vmatpush1.bf16.msra.mxu0 0
    %135 = vmatprep.mubr.bf16.mxu0 0
    %136 = vmatmul.mubr.bf16.gmra.mrb[0].mxu0 %v31
    %v137 = vpop.f32.mrb[0].mxu0
    %v138 = vadd.f32 %v53, %v137
    %v139 = vpop.f32.mrb[0].mxu0
    %v140 = vpop.f32.mrb[0].mxu0
    %v141 = vpop.f32.mrb[0].mxu0
    %142 = vdwg.mxu0
    %143 = vst [vmem:[#allocation5] sm:$0xff] %v138
    // Predicated region
    $region18: #{down_pool.1} parent=1 // pred_check
      _
    $region19: #{down_pool.1} parent=1 // pred_check_branch
      %145 = sbr.rel (0) target = $region21
    $region20: #{down_pool.1} parent=1 // pred_region
      %s147 = ssub.s32 128, 128
      %148 = vsyncadd [#allocation4], %s147
      %s150 = sshll.u32 [#allocation5], 4
      %s151 = int_to_ptr.vmem [resolvable:$true] %s150
      %153 = dma.vmem_to_hbm [thread:$0]  %s151, 128, %s3, [#allocation4]
    $region21: #{down_pool.1} parent=1 // pred_fallthru
      _
    // Predicated region
    $region22: #{down_pool.1} parent=1 // pred_check
      _
    $region23: #{down_pool.1} parent=1 // pred_check_branch
      %155 = sbr.rel (0) target = $region25
    $region24: #{down_pool.1} parent=1 // pred_region
      %156 = dma.done [#allocation4], 128
    $region25: #{down_pool.1} parent=1 // pred_fallthru
      _
    %157 = vsyncpa [#allocation3], 1
    %158 = vsyncpa [#allocation4], 1

</llo_original>
